<compile_context>
chip_gen: v6e
topology: v6e:2x2x1
jax: 0.10.0
libtpu: 0.0.40
codegen_flags: <defaults>
</compile_context>

<pallas_src>
import functools
import math

import jax
import jax.numpy as jnp
from jax.experimental import pallas as pl
from jax.experimental.pallas import tpu as pltpu

# Model hyper-parameters (small, consistent sizes).
HIDDEN = 32
NUM_HEADS = 2
NUM_SEGMENTS = 4
HPH = HIDDEN // NUM_HEADS                        # hidden_size_per_head = 16
NHD = NUM_HEADS * HPH                            # 32
PROJ_OUT = (NUM_SEGMENTS + 3) * NHD              # 224 (full projection width)
QKV_COLS = 3 * NHD                               # 96  (only q/k/v are live)
SCALE = float(HIDDEN) ** -0.5                    # np.power(hidden_size, -0.5)
DROPOUT_P = 0.2

PACK = 4                                         # rows packed per 128-lane super-row
_MAX_TILE_R4 = 1024                              # 4096 rows / grid step (v5e-safe)


def _round_up(x, m):
    return (x + m - 1) // m * m


def _pick_tile_r4(r4):
    """Tile size in super-rows (multiple of 16 for the bf16 output tiling)."""
    if r4 <= 256:
        # Small inputs: a single (overhead-dominated) step.
        return _round_up(max(r4, 1), 16)
    # Large inputs: big tiles (cheap per-step overhead) but keep >= 2 grid
    # steps so v7x's second TensorCore gets work.
    half = _round_up((r4 + 1) // 2, 16)
    return min(_MAX_TILE_R4, half)


def _sdpa_kernel(x_ref, w_ref, seed_ref, o_ref, *, training):
    # x_ref: (T4, 128) f32   -- 4 original rows packed per super-row (lane-dense)
    # w_ref: (128, 384) bf16 -- block-diagonal x4 replica of the (32, 96) weight
    #                           (softmax scale already folded into the q columns)
    # o_ref: (T4, 128) bf16  -- 4 rows x 32 outputs packed (lane-dense store)
    x = x_ref[...].astype(jnp.bfloat16)                 # in-kernel cast (no HBM pass)
    qkv = jnp.dot(x, w_ref[...],
                  preferred_element_type=jnp.float32)   # (T4, 384) f32, MXU

    if training and DROPOUT_P > 0.0:
        # Inverted dropout (train mode). RNG stream differs from torch's.
        pltpu.prng_seed(seed_ref[0], pl.program_id(0))  # hashed per-tile stream
        bits = pltpu.bitcast(
            pltpu.prng_random_bits((x.shape[0], 128)), jnp.uint32)
        keep = bits >= jnp.uint32(int(DROPOUT_P * (2 ** 32)))   # one full-vreg cmp
        inv_keep = jnp.float32(1.0 / (1.0 - DROPOUT_P))

    pieces = []
    for g in range(PACK):                               # unrolled over packed rows
        b = g * QKV_COLS
        q0 = qkv[:, b + 0 * HPH: b + 1 * HPH]
        q1 = qkv[:, b + 1 * HPH: b + 2 * HPH]
        k0 = qkv[:, b + 2 * HPH: b + 3 * HPH]
        k1 = qkv[:, b + 3 * HPH: b + 4 * HPH]
        v0 = qkv[:, b + 4 * HPH: b + 5 * HPH]
        v1 = qkv[:, b + 5 * HPH: b + 6 * HPH]

        # Per-row 2x2 attention scores (scale folded into the q weight columns).
        s00 = jnp.sum(q0 * k0, axis=-1, keepdims=True)
        s01 = jnp.sum(q0 * k1, axis=-1, keepdims=True)
        s10 = jnp.sum(q1 * k0, axis=-1, keepdims=True)
        s11 = jnp.sum(q1 * k1, axis=-1, keepdims=True)

        # Row-wise softmax over the 2 keys, unrolled; all f32.
        m0 = jnp.maximum(s00, s01)
        m1 = jnp.maximum(s10, s11)
        e00 = jnp.exp(s00 - m0)
        e01 = jnp.exp(s01 - m0)
        e10 = jnp.exp(s10 - m1)
        e11 = jnp.exp(s11 - m1)
        inv0 = pl.reciprocal(e00 + e01, approx=True)    # EUP slot
        inv1 = pl.reciprocal(e10 + e11, approx=True)
        if training and DROPOUT_P > 0.0:
            inv0 = inv0 * inv_keep                      # fold 1/(1-p) once
            inv1 = inv1 * inv_keep
        p00 = e00 * inv0
        p01 = e01 * inv0
        p10 = e10 * inv1
        p11 = e11 * inv1
        if training and DROPOUT_P > 0.0:
            c = 4 * g
            p00 = jnp.where(keep[:, c + 0: c + 1], p00, 0.0)
            p01 = jnp.where(keep[:, c + 1: c + 2], p01, 0.0)
            p10 = jnp.where(keep[:, c + 2: c + 3], p10, 0.0)
            p11 = jnp.where(keep[:, c + 3: c + 4], p11, 0.0)

        pieces.append(p00 * v0 + p01 * v1)              # head 0 output, (T4, 16)
        pieces.append(p10 * v0 + p11 * v1)              # head 1 output, (T4, 16)

    o_ref[...] = jnp.concatenate(pieces, axis=-1).astype(o_ref.dtype)   # (T4, 128)


def prepare_weight(w_torch):
    """Torch-layout weight (PROJ_OUT, HIDDEN) -> packed (128, 384) bf16 weight.

    One-time prep: keep only the live q/k/v columns, fold the softmax scale into
    the q columns, replicate 4x along a block diagonal (so 4 rows packed into one
    128-lane super-row get independent projections), cast to bf16 for the MXU.
    """
    w = jnp.transpose(w_torch.astype(jnp.float32))[:, :QKV_COLS]       # (32, 96)
    col_scale = jnp.concatenate(
        [jnp.full((NHD,), SCALE, jnp.float32), jnp.ones((2 * NHD,), jnp.float32)])
    w = w * col_scale[None, :]
    w4 = jnp.zeros((PACK * HIDDEN, PACK * QKV_COLS), jnp.float32)
    for g in range(PACK):
        w4 = w4.at[g * HIDDEN:(g + 1) * HIDDEN,
                   g * QKV_COLS:(g + 1) * QKV_COLS].set(w)
    return w4.astype(jnp.bfloat16)                                     # (128, 384)


@functools.partial(jax.jit, static_argnames=("training",))
def model_forward(query, key, value, w4_prepped, seed, *, training=False):
    """query/key/value: (B, S, HIDDEN); key/value unused (as in the torch code)."""
    del key, value
    B, S, H = query.shape
    assert H == HIDDEN
    R = B * S
    r4 = -(-R // PACK)                               # super-rows needed
    tile_r4 = _pick_tile_r4(r4)
    r4_pad = _round_up(r4, tile_r4)
    R_pad = r4_pad * PACK

    x2d = query.reshape(R, H).astype(jnp.float32)
    if R_pad != R:
        x2d = jnp.pad(x2d, ((0, R_pad - R), (0, 0)))
    xp = x2d.reshape(r4_pad, PACK * H)               # (r4_pad, 128): free row-major pack

    grid = (r4_pad // tile_r4,)
    rows = r4_pad * PACK
    flops = 2 * r4_pad * (PACK * H) * (PACK * QKV_COLS) + 256 * rows
    bytes_accessed = (r4_pad * PACK * H * 4              # f32 input
                      + (PACK * H) * (PACK * QKV_COLS) * 2   # bf16 weight
                      + rows * NHD * 2)                  # bf16 output

    out_packed = pl.pallas_call(
        functools.partial(_sdpa_kernel, training=training),
        out_shape=jax.ShapeDtypeStruct((r4_pad, PACK * NHD), jnp.bfloat16),
        grid=grid,
        in_specs=[
            pl.BlockSpec((tile_r4, PACK * H), lambda i: (i, 0)),           # x tile
            pl.BlockSpec((PACK * H, PACK * QKV_COLS), lambda i: (0, 0)),   # weight
            pl.BlockSpec(memory_space=pltpu.MemorySpace.SMEM),             # seed
        ],
        out_specs=pl.BlockSpec((tile_r4, PACK * NHD), lambda i: (i, 0)),
        compiler_params=pltpu.CompilerParams(
            dimension_semantics=("parallel",)),
        cost_estimate=pl.CostEstimate(
            flops=flops, transcendentals=6 * rows, bytes_accessed=bytes_accessed),
    )(xp, w4_prepped, seed)

    # Unpack super-rows back to rows (free reshape), drop padding.
    out = out_packed.reshape(R_pad, NHD)[:R].reshape(B, S, NHD)
    return out                                        # bf16 (see TODO above)


def ref_forward(query, w_torch):
    """Pure-JAX f32 reference of the (repaired) torch forward, eval mode."""
    B, S, H = query.shape
    w = jnp.transpose(w_torch.astype(jnp.float32))               # (H, PROJ_OUT)
    qkv = query.reshape(-1, H) @ w                               # (R, PROJ_OUT)
    qkv = qkv.reshape(-1, NUM_SEGMENTS + 3, NUM_HEADS, HPH)
    q, k, v = qkv[:, 0], qkv[:, 1], qkv[:, 2]                    # (R, NH, HPH)
    s = jnp.einsum("rnd,rmd->rnm", q, k) * SCALE
    p = jax.nn.softmax(s, axis=-1)
    out = jnp.einsum("rnm,rmd->rnd", p, v)
    return out.reshape(B, S, NHD)


if __name__ == "__main__":
    B, S = 2, 8
    root = jax.random.PRNGKey(0)
    kw, kq, kk, kv = jax.random.split(root, 4)

    # Deterministic parameter init (torch Linear-style uniform, weight (out,in)).
    bound = 1.0 / math.sqrt(HIDDEN)
    w_torch = jax.random.uniform(kw, (PROJ_OUT, HIDDEN), jnp.float32, -bound, bound)
    w4_prepped = prepare_weight(w_torch)                         # (128, 384) bf16

    query = jax.random.normal(kq, (B, S, HIDDEN), jnp.float32)
    key_in = jax.random.normal(kk, (B, S, HIDDEN), jnp.float32)   # unused by forward
    value_in = jax.random.normal(kv, (B, S, HIDDEN), jnp.float32) # unused by forward
    seed = jnp.zeros((1,), jnp.int32)

    out = jax.block_until_ready(
        model_forward(query, key_in, value_in, w4_prepped, seed, training=False))
    ref = ref_forward(query, w_torch)

    assert out.shape == (B, S, NHD), out.shape
    # Tolerance accounts for bf16 MXU inputs/weights, bf16 output, approx recip.
    if not bool(jnp.allclose(out.astype(jnp.float32), ref, atol=3e-2, rtol=3e-2)):
        err = float(jnp.max(jnp.abs(out.astype(jnp.float32) - ref)))
        raise SystemExit(f"mismatch between Pallas kernel and JAX reference "
                         f"(max abs err {err})")
    print("KERNEL_OK")
</pallas_src>

<mosaic_0001>
module attributes {stable_mosaic.version = 11 : i64} {
  func.func @_sdpa_kernel(%arg0: i32, %arg1: memref<16x128xf32, #tpu.memory_space<vmem>>, %arg2: memref<128x384xbf16, #tpu.memory_space<vmem>>, %arg3: memref<1xi32, #tpu.memory_space<smem>>, %arg4: memref<16x128xbf16, #tpu.memory_space<vmem>>) attributes {dimension_semantics = [#tpu.dimension_semantics<parallel>], iteration_bounds = array<i64: 1>, scalar_prefetch = 0 : i64, scratch_operands = 0 : i64, tpu.core_type = #tpu.core_type<tc>, window_params = [{transform_indices = @transform_0, window_bounds = array<i64: 16, 128>}, {pipeline_mode = #tpu.pipeline_mode<synchronous>, transform_indices = @transform_1, window_bounds = array<i64: 128, 384>}, {transform_indices = @transform_2, window_bounds = array<i64: 1>}, {transform_indices = @transform_3, window_bounds = array<i64: 16, 128>}]} {
    %c0 = arith.constant 0 : index
    %c0_0 = arith.constant 0 : index
    %0 = vector.load %arg1[%c0, %c0_0] : memref<16x128xf32, #tpu.memory_space<vmem>>, vector<16x128xf32>
    %1 = arith.truncf %0 : vector<16x128xf32> to vector<16x128xbf16>
    %c0_1 = arith.constant 0 : index
    %c0_2 = arith.constant 0 : index
    %2 = vector.load %arg2[%c0_1, %c0_2] : memref<128x384xbf16, #tpu.memory_space<vmem>>, vector<128x384xbf16>
    %cst = arith.constant dense<0.000000e+00> : vector<16x384xf32>
    %3 = tpu.matmul %1, %2, %cst {dimension_numbers = #tpu.dot_dimension_numbers<[1], [0], [0], [1], [0, 0, 1, 1], [], []>} : vector<16x128xbf16>, vector<128x384xbf16>, vector<16x384xf32> -> vector<16x384xf32>
    %4 = vector.extract_strided_slice %3 {offsets = [0, 0], sizes = [16, 16], strides = [1, 1]} : vector<16x384xf32> to vector<16x16xf32>
    %5 = vector.extract_strided_slice %3 {offsets = [0, 16], sizes = [16, 16], strides = [1, 1]} : vector<16x384xf32> to vector<16x16xf32>
    %6 = vector.extract_strided_slice %3 {offsets = [0, 32], sizes = [16, 16], strides = [1, 1]} : vector<16x384xf32> to vector<16x16xf32>
    %7 = vector.extract_strided_slice %3 {offsets = [0, 48], sizes = [16, 16], strides = [1, 1]} : vector<16x384xf32> to vector<16x16xf32>
    %8 = vector.extract_strided_slice %3 {offsets = [0, 64], sizes = [16, 16], strides = [1, 1]} : vector<16x384xf32> to vector<16x16xf32>
    %9 = vector.extract_strided_slice %3 {offsets = [0, 80], sizes = [16, 16], strides = [1, 1]} : vector<16x384xf32> to vector<16x16xf32>
    %10 = arith.mulf %4, %6 : vector<16x16xf32>
    %cst_3 = arith.constant dense<0.000000e+00> : vector<16xf32>
    %11 = vector.multi_reduction <add>, %10, %cst_3 [1] : vector<16x16xf32> to vector<16xf32>
    %12 = vector.shape_cast %11 : vector<16xf32> to vector<16x1xf32>
    %13 = arith.mulf %4, %7 : vector<16x16xf32>
    %cst_4 = arith.constant dense<0.000000e+00> : vector<16xf32>
    %14 = vector.multi_reduction <add>, %13, %cst_4 [1] : vector<16x16xf32> to vector<16xf32>
    %15 = vector.shape_cast %14 : vector<16xf32> to vector<16x1xf32>
    %16 = arith.mulf %5, %6 : vector<16x16xf32>
    %cst_5 = arith.constant dense<0.000000e+00> : vector<16xf32>
    %17 = vector.multi_reduction <add>, %16, %cst_5 [1] : vector<16x16xf32> to vector<16xf32>
    %18 = vector.shape_cast %17 : vector<16xf32> to vector<16x1xf32>
    %19 = arith.mulf %5, %7 : vector<16x16xf32>
    %cst_6 = arith.constant dense<0.000000e+00> : vector<16xf32>
    %20 = vector.multi_reduction <add>, %19, %cst_6 [1] : vector<16x16xf32> to vector<16xf32>
    %21 = vector.shape_cast %20 : vector<16xf32> to vector<16x1xf32>
    %22 = arith.maximumf %12, %15 : vector<16x1xf32>
    %23 = arith.maximumf %18, %21 : vector<16x1xf32>
    %24 = arith.subf %12, %22 : vector<16x1xf32>
    %25 = math.exp %24 : vector<16x1xf32>
    %26 = arith.subf %15, %22 : vector<16x1xf32>
    %27 = math.exp %26 : vector<16x1xf32>
    %28 = arith.subf %18, %23 : vector<16x1xf32>
    %29 = math.exp %28 : vector<16x1xf32>
    %30 = arith.subf %21, %23 : vector<16x1xf32>
    %31 = math.exp %30 : vector<16x1xf32>
    %32 = arith.addf %25, %27 : vector<16x1xf32>
    %33 = tpu.reciprocal %32 {approx = true} : vector<16x1xf32> -> vector<16x1xf32>
    %34 = arith.addf %29, %31 : vector<16x1xf32>
    %35 = tpu.reciprocal %34 {approx = true} : vector<16x1xf32> -> vector<16x1xf32>
    %36 = arith.mulf %25, %33 : vector<16x1xf32>
    %37 = arith.mulf %27, %33 : vector<16x1xf32>
    %38 = arith.mulf %29, %35 : vector<16x1xf32>
    %39 = arith.mulf %31, %35 : vector<16x1xf32>
    %40 = vector.broadcast %36 : vector<16x1xf32> to vector<16x16xf32>
    %41 = arith.mulf %40, %8 : vector<16x16xf32>
    %42 = vector.broadcast %37 : vector<16x1xf32> to vector<16x16xf32>
    %43 = arith.mulf %42, %9 : vector<16x16xf32>
    %44 = arith.addf %41, %43 : vector<16x16xf32>
    %45 = vector.broadcast %38 : vector<16x1xf32> to vector<16x16xf32>
    %46 = arith.mulf %45, %8 : vector<16x16xf32>
    %47 = vector.broadcast %39 : vector<16x1xf32> to vector<16x16xf32>
    %48 = arith.mulf %47, %9 : vector<16x16xf32>
    %49 = arith.addf %46, %48 : vector<16x16xf32>
    %50 = vector.extract_strided_slice %3 {offsets = [0, 96], sizes = [16, 16], strides = [1, 1]} : vector<16x384xf32> to vector<16x16xf32>
    %51 = vector.extract_strided_slice %3 {offsets = [0, 112], sizes = [16, 16], strides = [1, 1]} : vector<16x384xf32> to vector<16x16xf32>
    %52 = vector.extract_strided_slice %3 {offsets = [0, 128], sizes = [16, 16], strides = [1, 1]} : vector<16x384xf32> to vector<16x16xf32>
    %53 = vector.extract_strided_slice %3 {offsets = [0, 144], sizes = [16, 16], strides = [1, 1]} : vector<16x384xf32> to vector<16x16xf32>
    %54 = vector.extract_strided_slice %3 {offsets = [0, 160], sizes = [16, 16], strides = [1, 1]} : vector<16x384xf32> to vector<16x16xf32>
    %55 = vector.extract_strided_slice %3 {offsets = [0, 176], sizes = [16, 16], strides = [1, 1]} : vector<16x384xf32> to vector<16x16xf32>
    %56 = arith.mulf %50, %52 : vector<16x16xf32>
    %cst_7 = arith.constant dense<0.000000e+00> : vector<16xf32>
    %57 = vector.multi_reduction <add>, %56, %cst_7 [1] : vector<16x16xf32> to vector<16xf32>
    %58 = vector.shape_cast %57 : vector<16xf32> to vector<16x1xf32>
    %59 = arith.mulf %50, %53 : vector<16x16xf32>
    %cst_8 = arith.constant dense<0.000000e+00> : vector<16xf32>
    %60 = vector.multi_reduction <add>, %59, %cst_8 [1] : vector<16x16xf32> to vector<16xf32>
    %61 = vector.shape_cast %60 : vector<16xf32> to vector<16x1xf32>
    %62 = arith.mulf %51, %52 : vector<16x16xf32>
    %cst_9 = arith.constant dense<0.000000e+00> : vector<16xf32>
    %63 = vector.multi_reduction <add>, %62, %cst_9 [1] : vector<16x16xf32> to vector<16xf32>
    %64 = vector.shape_cast %63 : vector<16xf32> to vector<16x1xf32>
    %65 = arith.mulf %51, %53 : vector<16x16xf32>
    %cst_10 = arith.constant dense<0.000000e+00> : vector<16xf32>
    %66 = vector.multi_reduction <add>, %65, %cst_10 [1] : vector<16x16xf32> to vector<16xf32>
    %67 = vector.shape_cast %66 : vector<16xf32> to vector<16x1xf32>
    %68 = arith.maximumf %58, %61 : vector<16x1xf32>
    %69 = arith.maximumf %64, %67 : vector<16x1xf32>
    %70 = arith.subf %58, %68 : vector<16x1xf32>
    %71 = math.exp %70 : vector<16x1xf32>
    %72 = arith.subf %61, %68 : vector<16x1xf32>
    %73 = math.exp %72 : vector<16x1xf32>
    %74 = arith.subf %64, %69 : vector<16x1xf32>
    %75 = math.exp %74 : vector<16x1xf32>
    %76 = arith.subf %67, %69 : vector<16x1xf32>
    %77 = math.exp %76 : vector<16x1xf32>
    %78 = arith.addf %71, %73 : vector<16x1xf32>
    %79 = tpu.reciprocal %78 {approx = true} : vector<16x1xf32> -> vector<16x1xf32>
    %80 = arith.addf %75, %77 : vector<16x1xf32>
    %81 = tpu.reciprocal %80 {approx = true} : vector<16x1xf32> -> vector<16x1xf32>
    %82 = arith.mulf %71, %79 : vector<16x1xf32>
    %83 = arith.mulf %73, %79 : vector<16x1xf32>
    %84 = arith.mulf %75, %81 : vector<16x1xf32>
    %85 = arith.mulf %77, %81 : vector<16x1xf32>
    %86 = vector.broadcast %82 : vector<16x1xf32> to vector<16x16xf32>
    %87 = arith.mulf %86, %54 : vector<16x16xf32>
    %88 = vector.broadcast %83 : vector<16x1xf32> to vector<16x16xf32>
    %89 = arith.mulf %88, %55 : vector<16x16xf32>
    %90 = arith.addf %87, %89 : vector<16x16xf32>
    %91 = vector.broadcast %84 : vector<16x1xf32> to vector<16x16xf32>
    %92 = arith.mulf %91, %54 : vector<16x16xf32>
    %93 = vector.broadcast %85 : vector<16x1xf32> to vector<16x16xf32>
    %94 = arith.mulf %93, %55 : vector<16x16xf32>
    %95 = arith.addf %92, %94 : vector<16x16xf32>
    %96 = vector.extract_strided_slice %3 {offsets = [0, 192], sizes = [16, 16], strides = [1, 1]} : vector<16x384xf32> to vector<16x16xf32>
    %97 = vector.extract_strided_slice %3 {offsets = [0, 208], sizes = [16, 16], strides = [1, 1]} : vector<16x384xf32> to vector<16x16xf32>
    %98 = vector.extract_strided_slice %3 {offsets = [0, 224], sizes = [16, 16], strides = [1, 1]} : vector<16x384xf32> to vector<16x16xf32>
    %99 = vector.extract_strided_slice %3 {offsets = [0, 240], sizes = [16, 16], strides = [1, 1]} : vector<16x384xf32> to vector<16x16xf32>
    %100 = vector.extract_strided_slice %3 {offsets = [0, 256], sizes = [16, 16], strides = [1, 1]} : vector<16x384xf32> to vector<16x16xf32>
    %101 = vector.extract_strided_slice %3 {offsets = [0, 272], sizes = [16, 16], strides = [1, 1]} : vector<16x384xf32> to vector<16x16xf32>
    %102 = arith.mulf %96, %98 : vector<16x16xf32>
    %cst_11 = arith.constant dense<0.000000e+00> : vector<16xf32>
    %103 = vector.multi_reduction <add>, %102, %cst_11 [1] : vector<16x16xf32> to vector<16xf32>
    %104 = vector.shape_cast %103 : vector<16xf32> to vector<16x1xf32>
    %105 = arith.mulf %96, %99 : vector<16x16xf32>
    %cst_12 = arith.constant dense<0.000000e+00> : vector<16xf32>
    %106 = vector.multi_reduction <add>, %105, %cst_12 [1] : vector<16x16xf32> to vector<16xf32>
    %107 = vector.shape_cast %106 : vector<16xf32> to vector<16x1xf32>
    %108 = arith.mulf %97, %98 : vector<16x16xf32>
    %cst_13 = arith.constant dense<0.000000e+00> : vector<16xf32>
    %109 = vector.multi_reduction <add>, %108, %cst_13 [1] : vector<16x16xf32> to vector<16xf32>
    %110 = vector.shape_cast %109 : vector<16xf32> to vector<16x1xf32>
    %111 = arith.mulf %97, %99 : vector<16x16xf32>
    %cst_14 = arith.constant dense<0.000000e+00> : vector<16xf32>
    %112 = vector.multi_reduction <add>, %111, %cst_14 [1] : vector<16x16xf32> to vector<16xf32>
    %113 = vector.shape_cast %112 : vector<16xf32> to vector<16x1xf32>
    %114 = arith.maximumf %104, %107 : vector<16x1xf32>
    %115 = arith.maximumf %110, %113 : vector<16x1xf32>
    %116 = arith.subf %104, %114 : vector<16x1xf32>
    %117 = math.exp %116 : vector<16x1xf32>
    %118 = arith.subf %107, %114 : vector<16x1xf32>
    %119 = math.exp %118 : vector<16x1xf32>
    %120 = arith.subf %110, %115 : vector<16x1xf32>
    %121 = math.exp %120 : vector<16x1xf32>
    %122 = arith.subf %113, %115 : vector<16x1xf32>
    %123 = math.exp %122 : vector<16x1xf32>
    %124 = arith.addf %117, %119 : vector<16x1xf32>
    %125 = tpu.reciprocal %124 {approx = true} : vector<16x1xf32> -> vector<16x1xf32>
    %126 = arith.addf %121, %123 : vector<16x1xf32>
    %127 = tpu.reciprocal %126 {approx = true} : vector<16x1xf32> -> vector<16x1xf32>
    %128 = arith.mulf %117, %125 : vector<16x1xf32>
    %129 = arith.mulf %119, %125 : vector<16x1xf32>
    %130 = arith.mulf %121, %127 : vector<16x1xf32>
    %131 = arith.mulf %123, %127 : vector<16x1xf32>
    %132 = vector.broadcast %128 : vector<16x1xf32> to vector<16x16xf32>
    %133 = arith.mulf %132, %100 : vector<16x16xf32>
    %134 = vector.broadcast %129 : vector<16x1xf32> to vector<16x16xf32>
    %135 = arith.mulf %134, %101 : vector<16x16xf32>
    %136 = arith.addf %133, %135 : vector<16x16xf32>
    %137 = vector.broadcast %130 : vector<16x1xf32> to vector<16x16xf32>
    %138 = arith.mulf %137, %100 : vector<16x16xf32>
    %139 = vector.broadcast %131 : vector<16x1xf32> to vector<16x16xf32>
    %140 = arith.mulf %139, %101 : vector<16x16xf32>
    %141 = arith.addf %138, %140 : vector<16x16xf32>
    %142 = vector.extract_strided_slice %3 {offsets = [0, 288], sizes = [16, 16], strides = [1, 1]} : vector<16x384xf32> to vector<16x16xf32>
    %143 = vector.extract_strided_slice %3 {offsets = [0, 304], sizes = [16, 16], strides = [1, 1]} : vector<16x384xf32> to vector<16x16xf32>
    %144 = vector.extract_strided_slice %3 {offsets = [0, 320], sizes = [16, 16], strides = [1, 1]} : vector<16x384xf32> to vector<16x16xf32>
    %145 = vector.extract_strided_slice %3 {offsets = [0, 336], sizes = [16, 16], strides = [1, 1]} : vector<16x384xf32> to vector<16x16xf32>
    %146 = vector.extract_strided_slice %3 {offsets = [0, 352], sizes = [16, 16], strides = [1, 1]} : vector<16x384xf32> to vector<16x16xf32>
    %147 = vector.extract_strided_slice %3 {offsets = [0, 368], sizes = [16, 16], strides = [1, 1]} : vector<16x384xf32> to vector<16x16xf32>
    %148 = arith.mulf %142, %144 : vector<16x16xf32>
    %cst_15 = arith.constant dense<0.000000e+00> : vector<16xf32>
    %149 = vector.multi_reduction <add>, %148, %cst_15 [1] : vector<16x16xf32> to vector<16xf32>
    %150 = vector.shape_cast %149 : vector<16xf32> to vector<16x1xf32>
    %151 = arith.mulf %142, %145 : vector<16x16xf32>
    %cst_16 = arith.constant dense<0.000000e+00> : vector<16xf32>
    %152 = vector.multi_reduction <add>, %151, %cst_16 [1] : vector<16x16xf32> to vector<16xf32>
    %153 = vector.shape_cast %152 : vector<16xf32> to vector<16x1xf32>
    %154 = arith.mulf %143, %144 : vector<16x16xf32>
    %cst_17 = arith.constant dense<0.000000e+00> : vector<16xf32>
    %155 = vector.multi_reduction <add>, %154, %cst_17 [1] : vector<16x16xf32> to vector<16xf32>
    %156 = vector.shape_cast %155 : vector<16xf32> to vector<16x1xf32>
    %157 = arith.mulf %143, %145 : vector<16x16xf32>
    %cst_18 = arith.constant dense<0.000000e+00> : vector<16xf32>
    %158 = vector.multi_reduction <add>, %157, %cst_18 [1] : vector<16x16xf32> to vector<16xf32>
    %159 = vector.shape_cast %158 : vector<16xf32> to vector<16x1xf32>
    %160 = arith.maximumf %150, %153 : vector<16x1xf32>
    %161 = arith.maximumf %156, %159 : vector<16x1xf32>
    %162 = arith.subf %150, %160 : vector<16x1xf32>
    %163 = math.exp %162 : vector<16x1xf32>
    %164 = arith.subf %153, %160 : vector<16x1xf32>
    %165 = math.exp %164 : vector<16x1xf32>
    %166 = arith.subf %156, %161 : vector<16x1xf32>
    %167 = math.exp %166 : vector<16x1xf32>
    %168 = arith.subf %159, %161 : vector<16x1xf32>
    %169 = math.exp %168 : vector<16x1xf32>
    %170 = arith.addf %163, %165 : vector<16x1xf32>
    %171 = tpu.reciprocal %170 {approx = true} : vector<16x1xf32> -> vector<16x1xf32>
    %172 = arith.addf %167, %169 : vector<16x1xf32>
    %173 = tpu.reciprocal %172 {approx = true} : vector<16x1xf32> -> vector<16x1xf32>
    %174 = arith.mulf %163, %171 : vector<16x1xf32>
    %175 = arith.mulf %165, %171 : vector<16x1xf32>
    %176 = arith.mulf %167, %173 : vector<16x1xf32>
    %177 = arith.mulf %169, %173 : vector<16x1xf32>
    %178 = vector.broadcast %174 : vector<16x1xf32> to vector<16x16xf32>
    %179 = arith.mulf %178, %146 : vector<16x16xf32>
    %180 = vector.broadcast %175 : vector<16x1xf32> to vector<16x16xf32>
    %181 = arith.mulf %180, %147 : vector<16x16xf32>
    %182 = arith.addf %179, %181 : vector<16x16xf32>
    %183 = vector.broadcast %176 : vector<16x1xf32> to vector<16x16xf32>
    %184 = arith.mulf %183, %146 : vector<16x16xf32>
    %185 = vector.broadcast %177 : vector<16x1xf32> to vector<16x16xf32>
    %186 = arith.mulf %185, %147 : vector<16x16xf32>
    %187 = arith.addf %184, %186 : vector<16x16xf32>
    %188 = tpu.concatenate %44, %49, %90, %95, %136, %141, %182, %187 in 1 : vector<16x16xf32>, vector<16x16xf32>, vector<16x16xf32>, vector<16x16xf32>, vector<16x16xf32>, vector<16x16xf32>, vector<16x16xf32>, vector<16x16xf32> -> vector<16x128xf32>
    %189 = arith.truncf %188 : vector<16x128xf32> to vector<16x128xbf16>
    %c0_19 = arith.constant 0 : index
    %c0_20 = arith.constant 0 : index
    %190 = vector.load %arg4[%c0_19, %c0_20] : memref<16x128xbf16, #tpu.memory_space<vmem>>, vector<16x128xbf16>
    tpu.vector_store %arg4[%c0_19, %c0_20], %189 {strides = array<i32>} : memref<16x128xbf16, #tpu.memory_space<vmem>>, vector<16x128xbf16>,
    return
  }
  func.func @transform_0(%arg0: i32) -> (i32, i32) {
    %c0_i32 = arith.constant 0 : i32
    %c0_i32_0 = arith.constant 0 : i32
    return %arg0, %c0_i32 : i32, i32
  }
  func.func @transform_1(%arg0: i32) -> (i32, i32) {
    %c0_i32 = arith.constant 0 : i32
    %c0_i32_0 = arith.constant 0 : i32
    %c0_i32_1 = arith.constant 0 : i32
    return %c0_i32, %c0_i32_0 : i32, i32
  }
  func.func @transform_2(%arg0: i32) -> i32 {
    %c0_i32 = arith.constant 0 : i32
    %c0_i32_0 = arith.constant 0 : i32
    return %c0_i32 : i32
  }
  func.func @transform_3(%arg0: i32) -> (i32, i32) {
    %c0_i32 = arith.constant 0 : i32
    %c0_i32_0 = arith.constant 0 : i32
    return %arg0, %c0_i32 : i32, i32
  }
}

</mosaic_0001>

<llo_original>
// kernel: model_forward.1
$region0: #{model_forward.1}
  #allocation0 [shape = 'u32[]', space=smem, size = 0x4, offset = 0x4, fixed_abs, tag = 'smem constant byte address 0x4 - core index']
  #allocation1 [shape = 'u32[144,128]{1,0:T(1,128)}', space=vmem, size = 0x12000, scoped, tag = 'internal scratch']
  #allocation2 [shape = 's32[1]{0:T(128)S(6)}', space=smem, size = 0x200, scoped, tag = 'scoped memory for model_forward.1']
  %s0 = inlined_call_operand.vmem [shape: f32[16,128], index: 0, kind: input, shape index: {}]
  %s1 = inlined_call_operand.hbm [shape: bf16[128,384], index: 1, kind: input, shape index: {}]
  %s2 = inlined_call_operand.<no memory space> [shape: s32[1], index: 2, kind: input, shape index: {}]
  %s3 = inlined_call_operand.vmem [shape: bf16[16,128], index: 3, kind: output, shape index: {}]
  %s4 = sld [smem:[#allocation0]]
  $region26: #{model_forward.1} parent=0
    _
  %s6 = ssub.s32 1, %s4
  %s7 = scalar_select 0, %s6, %s4
  %8 = sst [smem:[#allocation2]] %s2
  $region1: #{model_forward.1} parent=0
    #allocation3 [shape = 'u8[98304]{0}', space=vmem, size = 0x18000, scoped, tag = 'input window, operand 1, single buffered']
    #allocation4 [shape = 's32[1]{0}', space=sflag, size = 0x4, scoped, tag = 'scoped memory for model_forward.1']
    %9 = vsyncpa [#allocation4], 0
    // Predicated region
    $region2: #{model_forward.1} parent=1 // pred_check
      _
    $region3: #{model_forward.1} parent=1 // pred_check_branch
      %11 = sbr.rel (0) target = $region5
    $region4: #{model_forward.1} parent=1 // pred_region
      _
    $region5: #{model_forward.1} parent=1 // pred_fallthru
      _
    // Predicated region
    $region6: #{model_forward.1} parent=1 // pred_check
      _
    $region7: #{model_forward.1} parent=1 // pred_check_branch
      %13 = sbr.rel (0) target = $region9
    $region8: #{model_forward.1} parent=1 // pred_region
      %s15 = ssub.s32 3072, 3072
      %16 = vsyncadd [#allocation4], %s15
      %s17 = sshll.u32 [#allocation3], 4
      %s18 = int_to_ptr.vmem [resolvable:$true] %s17
      %23 = dma.hbm_to_vmem [thread:$0]  %s1, 3072, %s18, [#allocation4], 192, 192, 12
    $region9: #{model_forward.1} parent=1 // pred_fallthru
      _
    // Predicated region
    $region10: #{model_forward.1} parent=1 // pred_check
      _
    $region11: #{model_forward.1} parent=1 // pred_check_branch
      %25 = sbr.rel (0) target = $region13
    $region12: #{model_forward.1} parent=1 // pred_region
      _
    $region13: #{model_forward.1} parent=1 // pred_fallthru
      _
    // Predicated region
    $region14: #{model_forward.1} parent=1 // pred_check
      _
    $region15: #{model_forward.1} parent=1 // pred_check_branch
      %27 = sbr.rel (0) target = $region17
    $region16: #{model_forward.1} parent=1 // pred_region
      %28 = dma.done [#allocation4], 3072
    $region17: #{model_forward.1} parent=1 // pred_fallthru
      _
    %v30 = vld [vmem:[%s0] sm:$0xff]
    %v31 = vld [vmem:[%s0 + $0x8] sm:$0xff]
    %v32 = vpack.c.bf16 %v31, %v30
    %v33 = vld [vmem:[#allocation3] sm:$0xff]
    %v34 = vld [vmem:[#allocation3 + $0x8] sm:$0xf]
    %v35 = vld [vmem:[#allocation3 + $0xc] sm:$0xff]
    %v36 = vld [vmem:[#allocation3 + $0x14] sm:$0xf]
    %v37 = vld [vmem:[#allocation3 + $0x18] sm:$0xff]
    %v38 = vld [vmem:[#allocation3 + $0x20] sm:$0xf]
    %v39 = vld [vmem:[#allocation3 + $0x24] sm:$0xff]
    %v40 = vld [vmem:[#allocation3 + $0x2c] sm:$0xf]
    %v41 = vld [vmem:[#allocation3 + $0x30] sm:$0xff]
    %v42 = vld [vmem:[#allocation3 + $0x38] sm:$0xf]
    %v43 = vld [vmem:[#allocation3 + $0x3c] sm:$0xff]
    %v44 = vld [vmem:[#allocation3 + $0x44] sm:$0xf]
    %v45 = vld [vmem:[#allocation3 + $0x48] sm:$0xff]
    %v46 = vld [vmem:[#allocation3 + $0x50] sm:$0xf]
    %v47 = vld [vmem:[#allocation3 + $0x54] sm:$0xff]
    %v48 = vld [vmem:[#allocation3 + $0x5c] sm:$0xf]
    %v49 = vld [vmem:[#allocation3 + $0x60] sm:$0xff]
    %v50 = vld [vmem:[#allocation3 + $0x68] sm:$0xf]
    %v51 = vld [vmem:[#allocation3 + $0x6c] sm:$0xff]
    %v52 = vld [vmem:[#allocation3 + $0x74] sm:$0xf]
    %v53 = vld [vmem:[#allocation3 + $0x78] sm:$0xff]
    %v54 = vld [vmem:[#allocation3 + $0x80] sm:$0xf]
    %v55 = vld [vmem:[#allocation3 + $0x84] sm:$0xff]
    %v56 = vld [vmem:[#allocation3 + $0x8c] sm:$0xf]
    %v57 = vld [vmem:[#allocation3 + $0x90] sm:$0xff]
    %v58 = vld [vmem:[#allocation3 + $0x98] sm:$0xf]
    %v59 = vld [vmem:[#allocation3 + $0x9c] sm:$0xff]
    %v60 = vld [vmem:[#allocation3 + $0xa4] sm:$0xf]
    %v61 = vld [vmem:[#allocation3 + $0xa8] sm:$0xff]
    %v62 = vld [vmem:[#allocation3 + $0xb0] sm:$0xf]
    %v63 = vld [vmem:[#allocation3 + $0xb4] sm:$0xff]
    %v64 = vld [vmem:[#allocation3 + $0xbc] sm:$0xf]
    %v97 = vunpack.c.l.b16 %v33
    %v98 = vunpack.c.h.b16 %v33
    %v99 = vunpack.c.l.b16 %v34
    %v100 = vunpack.c.l.b16 %v35
    %v101 = vunpack.c.h.b16 %v35
    %v102 = vunpack.c.l.b16 %v36
    %v103 = vunpack.c.l.b16 %v37
    %v104 = vunpack.c.h.b16 %v37
    %v105 = vunpack.c.l.b16 %v38
    %v106 = vunpack.c.l.b16 %v39
    %v107 = vunpack.c.h.b16 %v39
    %v108 = vunpack.c.l.b16 %v40
    %v109 = vunpack.c.l.b16 %v41
    %v110 = vunpack.c.h.b16 %v41
    %v111 = vunpack.c.l.b16 %v42
    %v112 = vunpack.c.l.b16 %v43
    %v113 = vunpack.c.h.b16 %v43
    %v114 = vunpack.c.l.b16 %v44
    %v115 = vunpack.c.l.b16 %v45
    %v116 = vunpack.c.h.b16 %v45
    %v117 = vunpack.c.l.b16 %v46
    %v118 = vunpack.c.l.b16 %v47
    %v119 = vunpack.c.h.b16 %v47
    %v120 = vunpack.c.l.b16 %v48
    %v121 = vunpack.c.l.b16 %v49
    %v122 = vunpack.c.h.b16 %v49
    %v123 = vunpack.c.l.b16 %v50
    %v124 = vunpack.c.l.b16 %v51
    %v125 = vunpack.c.h.b16 %v51
    %v126 = vunpack.c.l.b16 %v52
    %v127 = vunpack.c.l.b16 %v53
    %v128 = vunpack.c.h.b16 %v53
    %v129 = vunpack.c.l.b16 %v54
    %v130 = vunpack.c.l.b16 %v55
    %v131 = vunpack.c.h.b16 %v55
    %v132 = vunpack.c.l.b16 %v56
    %v133 = vunpack.c.l.b16 %v57
    %v134 = vunpack.c.h.b16 %v57
    %v135 = vunpack.c.l.b16 %v58
    %v136 = vunpack.c.l.b16 %v59
    %v137 = vunpack.c.h.b16 %v59
    %v138 = vunpack.c.l.b16 %v60
    %v139 = vunpack.c.l.b16 %v61
    %v140 = vunpack.c.h.b16 %v61
    %v141 = vunpack.c.l.b16 %v62
    %v142 = vunpack.c.l.b16 %v63
    %v143 = vunpack.c.h.b16 %v63
    %v144 = vunpack.c.l.b16 %v64
    %v145 = vpack.c.b16 %v100, %v97
    %v146 = vpack.c.b16 %v101, %v98
    %v147 = vpack.c.b16 %v102, %v99
    %v148 = vpack.c.b16 %v106, %v103
    %v149 = vpack.c.b16 %v107, %v104
    %v150 = vpack.c.b16 %v108, %v105
    %v151 = vpack.c.b16 %v112, %v109
    %v152 = vpack.c.b16 %v113, %v110
    %v153 = vpack.c.b16 %v114, %v111
    %v154 = vpack.c.b16 %v118, %v115
    %v155 = vpack.c.b16 %v119, %v116
    %v156 = vpack.c.b16 %v120, %v117
    %v157 = vpack.c.b16 %v124, %v121
    %v158 = vpack.c.b16 %v125, %v122
    %v159 = vpack.c.b16 %v126, %v123
    %v160 = vpack.c.b16 %v130, %v127
    %v161 = vpack.c.b16 %v131, %v128
    %v162 = vpack.c.b16 %v132, %v129
    %v163 = vpack.c.b16 %v136, %v133
    %v164 = vpack.c.b16 %v137, %v134
    %v165 = vpack.c.b16 %v138, %v135
    %v166 = vpack.c.b16 %v142, %v139
    %v167 = vpack.c.b16 %v143, %v140
    %v168 = vpack.c.b16 %v144, %v141
    %193 = vmatprep.subr.bf16.mxu0 %v167
    %194 = vmatpush1.bf16.msra.mxu0 %v166
    %195 = vmatprep.subr.bf16.mxu0 %v164
    %196 = vmatpush1.bf16.msra.mxu0 %v163
    %197 = vmatprep.subr.bf16.mxu0 %v161
    %198 = vmatpush1.bf16.msra.mxu0 %v160
    %199 = vmatprep.subr.bf16.mxu0 %v158
    %200 = vmatpush1.bf16.msra.mxu0 %v157
    %201 = vmatprep.subr.bf16.mxu0 %v155
    %202 = vmatpush1.bf16.msra.mxu0 %v154
    %203 = vmatprep.subr.bf16.mxu0 %v152
    %204 = vmatpush1.bf16.msra.mxu0 %v151
    %205 = vmatprep.subr.bf16.mxu0 %v149
    %206 = vmatpush1.bf16.msra.mxu0 %v148
    %207 = vmatprep.subr.bf16.mxu0 %v146
    %208 = vmatpush1.bf16.msra.mxu0 %v145
    %209 = vmatprep.subr.bf16.mxu0 0
    %210 = vmatpush2.bf16.msra.mxu0 0
    %211 = vmatprep.subr.bf16.mxu0 0
    %212 = vmatpush2.bf16.msra.mxu0 0
    %213 = vmatprep.subr.bf16.mxu0 0
    %214 = vmatpush2.bf16.msra.mxu0 0
    %215 = vmatprep.subr.bf16.mxu0 0
    %216 = vmatpush2.bf16.msra.mxu0 0
    %217 = vmatprep.subr.bf16.mxu0 0
    %218 = vmatpush2.bf16.msra.mxu0 0
    %219 = vmatprep.subr.bf16.mxu0 0
    %220 = vmatpush2.bf16.msra.mxu0 0
    %221 = vmatprep.subr.bf16.mxu0 0
    %222 = vmatpush2.bf16.msra.mxu0 0
    %223 = vmatprep.subr.bf16.mxu0 0
    %224 = vmatpush2.bf16.msra.mxu0 0
    %225 = vmatprep.mubr.bf16.mxu0 0
    %226 = vmatmul.mubr.bf16.gmra.mxu0 %v32
    %v227 = vpop.f32.mrf.mxu0
    %v228 = vadd.f32 0.0, %v227
    %v229 = vpop.f32.mrf.mxu0
    %v230 = vadd.f32 0.0, %v229
    %v231 = vpop.f32.mrf.mxu0
    %v232 = vadd.f32 0.0, %v231
    %v233 = vpop.f32.mrf.mxu0
    %v234 = vadd.f32 0.0, %v233
    %235 = vdwg.mxu0
    %236 = vmatprep.subr.bf16.mxu0 0
    %237 = vmatpush1.bf16.msra.mxu0 %v168
    %238 = vmatprep.subr.bf16.mxu0 0
    %239 = vmatpush1.bf16.msra.mxu0 %v165
    %240 = vmatprep.subr.bf16.mxu0 0
    %241 = vmatpush1.bf16.msra.mxu0 %v162
    %242 = vmatprep.subr.bf16.mxu0 0
    %243 = vmatpush1.bf16.msra.mxu0 %v159
    %244 = vmatprep.subr.bf16.mxu0 0
    %245 = vmatpush1.bf16.msra.mxu0 %v156
    %246 = vmatprep.subr.bf16.mxu0 0
    %247 = vmatpush1.bf16.msra.mxu0 %v153
    %248 = vmatprep.subr.bf16.mxu0 0
    %249 = vmatpush1.bf16.msra.mxu0 %v150
    %250 = vmatprep.subr.bf16.mxu0 0
    %251 = vmatpush1.bf16.msra.mxu0 %v147
    %252 = vmatprep.subr.bf16.mxu0 0
    %253 = vmatpush2.bf16.msra.mxu0 0
    %254 = vmatprep.subr.bf16.mxu0 0
    %255 = vmatpush2.bf16.msra.mxu0 0
    %256 = vmatprep.subr.bf16.mxu0 0
    %257 = vmatpush2.bf16.msra.mxu0 0
    %258 = vmatprep.subr.bf16.mxu0 0
    %259 = vmatpush2.bf16.msra.mxu0 0
    %260 = vmatprep.subr.bf16.mxu0 0
    %261 = vmatpush2.bf16.msra.mxu0 0
    %262 = vmatprep.subr.bf16.mxu0 0
    %263 = vmatpush2.bf16.msra.mxu0 0
    %264 = vmatprep.subr.bf16.mxu0 0
    %265 = vmatpush2.bf16.msra.mxu0 0
    %266 = vmatprep.subr.bf16.mxu0 0
    %267 = vmatpush2.bf16.msra.mxu0 0
    %268 = vmatprep.mubr.bf16.mxu0 0
    %269 = vmatmul.mubr.bf16.gmra.mxu0 %v32
    %v270 = vpop.f32.mrf.mxu0
    %v271 = vadd.f32 0.0, %v270
    %v272 = vpop.f32.mrf.mxu0
    %v273 = vpop.f32.mrf.mxu0
    %v274 = vadd.f32 0.0, %v273
    %v275 = vpop.f32.mrf.mxu0
    %276 = vdwg.mxu0
    %279 = vrot.lane.b32.xlu0 %v228, 96
    %v280 = vpop.permute.xlu0 %279
    %281 = vrot.lane.b32.xlu0 %v232, 96
    %v282 = vpop.permute.xlu0 %281
    %v285 = vmul.f32 %v228, %v280
    %v286 = vmul.f32 %v232, %v282
    %vm287 = vcmask 130048
    %v288 = vsel %vm287, %v285, 0.0
    %289 = vadd.xlane.f32.xlu0 %v288
    %v290 = vpop.xlane.xlu0 %289
    %v291 = vsel %vm287, %v286, 0.0
    %292 = vadd.xlane.f32.xlu0 %v291
    %v293 = vpop.xlane.xlu0 %292
    %294 = vrot.lane.b32.xlu0 %v228, 80
    %v295 = vpop.permute.xlu0 %294
    %296 = vrot.lane.b32.xlu0 %v232, 80
    %v297 = vpop.permute.xlu0 %296
    %v300 = vmul.f32 %v228, %v295
    %v301 = vmul.f32 %v232, %v297
    %v302 = vsel %vm287, %v300, 0.0
    %303 = vadd.xlane.f32.xlu0 %v302
    %v304 = vpop.xlane.xlu0 %303
    %v305 = vsel %vm287, %v301, 0.0
    %306 = vadd.xlane.f32.xlu0 %v305
    %v307 = vpop.xlane.xlu0 %306
    %308 = vrot.lane.b32.xlu0 %v228, 112
    %v309 = vpop.permute.xlu0 %308
    %310 = vrot.lane.b32.xlu0 %v232, 112
    %v311 = vpop.permute.xlu0 %310
    %v314 = vmul.f32 %v228, %v309
    %v315 = vmul.f32 %v232, %v311
    %318 = vrot.lane.b32.xlu0 %v314, 112
    %v319 = vpop.permute.xlu0 %318
    %320 = vrot.lane.b32.xlu0 %v315, 112
    %v321 = vpop.permute.xlu0 %320
    %v324 = vsel %vm287, %v319, 0.0
    %325 = vadd.xlane.f32.xlu0 %v324
    %v326 = vpop.xlane.xlu0 %325
    %v327 = vsel %vm287, %v321, 0.0
    %328 = vadd.xlane.f32.xlu0 %v327
    %v329 = vpop.xlane.xlu0 %328
    %332 = vrot.lane.b32.xlu0 %v285, 112
    %v333 = vpop.permute.xlu0 %332
    %334 = vrot.lane.b32.xlu0 %v286, 112
    %v335 = vpop.permute.xlu0 %334
    %v338 = vsel %vm287, %v333, 0.0
    %339 = vadd.xlane.f32.xlu0 %v338
    %v340 = vpop.xlane.xlu0 %339
    %v341 = vsel %vm287, %v335, 0.0
    %342 = vadd.xlane.f32.xlu0 %v341
    %v343 = vpop.xlane.xlu0 %342
    %v344 = vmax.f32 %v290, %v304
    %v345 = vmax.f32 %v293, %v307
    %v346 = vmax.f32 %v326, %v340
    %v347 = vmax.f32 %v329, %v343
    %v348 = vsub.f32 %v290, %v344
    %v349 = vsub.f32 %v293, %v345
    %v350 = vmul.f32 %v348, 1.442695
    %v351 = vpow.pop %v350
    %v352 = vmul.f32 %v349, 1.442695
    %v353 = vpow.pop %v352
    %v354 = vsub.f32 %v304, %v344
    %v355 = vsub.f32 %v307, %v345
    %v356 = vmul.f32 %v354, 1.442695
    %v357 = vpow.pop %v356
    %v358 = vmul.f32 %v355, 1.442695
    %v359 = vpow.pop %v358
    %v360 = vsub.f32 %v326, %v346
    %v361 = vsub.f32 %v329, %v347
    %v362 = vmul.f32 %v360, 1.442695
    %v363 = vpow.pop %v362
    %v364 = vmul.f32 %v361, 1.442695
    %v365 = vpow.pop %v364
    %v366 = vsub.f32 %v340, %v346
    %v367 = vsub.f32 %v343, %v347
    %v368 = vmul.f32 %v366, 1.442695
    %v369 = vpow.pop %v368
    %v370 = vmul.f32 %v367, 1.442695
    %v371 = vpow.pop %v370
    %v372 = vadd.f32 %v351, %v357
    %v373 = vadd.f32 %v353, %v359
    %v374 = vrcp.pop %v372
    %v375 = vrcp.pop %v373
    %v376 = vadd.f32 %v363, %v369
    %v377 = vadd.f32 %v365, %v371
    %v378 = vrcp.pop %v376
    %v379 = vrcp.pop %v377
    %v380 = vmul.f32 %v351, %v374
    %v381 = vmul.f32 %v353, %v375
    %v382 = vmul.f32 %v357, %v374
    %v383 = vmul.f32 %v359, %v375
    %v384 = vmul.f32 %v363, %v378
    %v385 = vmul.f32 %v365, %v379
    %v386 = vmul.f32 %v369, %v378
    %v387 = vmul.f32 %v371, %v379
    %v388 = vmul.f32 %v380, %v228
    %v389 = vmul.f32 %v381, %v232
    %v390 = vmul.f32 %v382, %v228
    %v391 = vmul.f32 %v383, %v232
    %394 = vrot.lane.b32.xlu0 %v390, 112
    %v395 = vpop.permute.xlu0 %394
    %396 = vrot.lane.b32.xlu0 %v391, 112
    %v397 = vpop.permute.xlu0 %396
    %v400 = vadd.f32 %v388, %v395
    %v401 = vadd.f32 %v389, %v397
    %v402 = vmul.f32 %v384, %v228
    %v403 = vmul.f32 %v385, %v232
    %v404 = vmul.f32 %v386, %v228
    %v405 = vmul.f32 %v387, %v232
    %408 = vrot.lane.b32.xlu0 %v404, 112
    %v409 = vpop.permute.xlu0 %408
    %410 = vrot.lane.b32.xlu0 %v405, 112
    %v411 = vpop.permute.xlu0 %410
    %v414 = vadd.f32 %v402, %v409
    %v415 = vadd.f32 %v403, %v411
    %418 = vrot.lane.b32.xlu0 %v230, 96
    %v419 = vpop.permute.xlu0 %418
    %420 = vrot.lane.b32.xlu0 %v234, 96
    %v421 = vpop.permute.xlu0 %420
    %v424 = vmul.f32 %v228, %v419
    %v425 = vmul.f32 %v232, %v421
    %428 = vrot.lane.b32.xlu0 %v424, 32
    %v429 = vpop.permute.xlu0 %428
    %430 = vrot.lane.b32.xlu0 %v425, 32
    %v431 = vpop.permute.xlu0 %430
    %v434 = vsel %vm287, %v429, 0.0
    %435 = vadd.xlane.f32.xlu0 %v434
    %v436 = vpop.xlane.xlu0 %435
    %v437 = vsel %vm287, %v431, 0.0
    %438 = vadd.xlane.f32.xlu0 %v437
    %v439 = vpop.xlane.xlu0 %438
    %440 = vrot.lane.b32.xlu0 %v230, 80
    %v441 = vpop.permute.xlu0 %440
    %442 = vrot.lane.b32.xlu0 %v234, 80
    %v443 = vpop.permute.xlu0 %442
    %v446 = vmul.f32 %v228, %v441
    %v447 = vmul.f32 %v232, %v443
    %450 = vrot.lane.b32.xlu0 %v446, 32
    %v451 = vpop.permute.xlu0 %450
    %452 = vrot.lane.b32.xlu0 %v447, 32
    %v453 = vpop.permute.xlu0 %452
    %v456 = vsel %vm287, %v451, 0.0
    %457 = vadd.xlane.f32.xlu0 %v456
    %v458 = vpop.xlane.xlu0 %457
    %v459 = vsel %vm287, %v453, 0.0
    %460 = vadd.xlane.f32.xlu0 %v459
    %v461 = vpop.xlane.xlu0 %460
    %462 = vrot.lane.b32.xlu0 %v230, 112
    %v463 = vpop.permute.xlu0 %462
    %464 = vrot.lane.b32.xlu0 %v234, 112
    %v465 = vpop.permute.xlu0 %464
    %v468 = vmul.f32 %v228, %v463
    %v469 = vmul.f32 %v232, %v465
    %472 = vrot.lane.b32.xlu0 %v468, 16
    %v473 = vpop.permute.xlu0 %472
    %474 = vrot.lane.b32.xlu0 %v469, 16
    %v475 = vpop.permute.xlu0 %474
    %v478 = vsel %vm287, %v473, 0.0
    %479 = vadd.xlane.f32.xlu0 %v478
    %v480 = vpop.xlane.xlu0 %479
    %v481 = vsel %vm287, %v475, 0.0
    %482 = vadd.xlane.f32.xlu0 %v481
    %v483 = vpop.xlane.xlu0 %482
    %484 = vrot.lane.b32.xlu0 %v424, 16
    %v485 = vpop.permute.xlu0 %484
    %486 = vrot.lane.b32.xlu0 %v425, 16
    %v487 = vpop.permute.xlu0 %486
    %v490 = vsel %vm287, %v485, 0.0
    %491 = vadd.xlane.f32.xlu0 %v490
    %v492 = vpop.xlane.xlu0 %491
    %v493 = vsel %vm287, %v487, 0.0
    %494 = vadd.xlane.f32.xlu0 %v493
    %v495 = vpop.xlane.xlu0 %494
    %v496 = vmax.f32 %v436, %v458
    %v497 = vmax.f32 %v439, %v461
    %v498 = vmax.f32 %v480, %v492
    %v499 = vmax.f32 %v483, %v495
    %v500 = vsub.f32 %v436, %v496
    %v501 = vsub.f32 %v439, %v497
    %v502 = vmul.f32 %v500, 1.442695
    %v503 = vpow.pop %v502
    %v504 = vmul.f32 %v501, 1.442695
    %v505 = vpow.pop %v504
    %v506 = vsub.f32 %v458, %v496
    %v507 = vsub.f32 %v461, %v497
    %v508 = vmul.f32 %v506, 1.442695
    %v509 = vpow.pop %v508
    %v510 = vmul.f32 %v507, 1.442695
    %v511 = vpow.pop %v510
    %v512 = vsub.f32 %v480, %v498
    %v513 = vsub.f32 %v483, %v499
    %v514 = vmul.f32 %v512, 1.442695
    %v515 = vpow.pop %v514
    %v516 = vmul.f32 %v513, 1.442695
    %v517 = vpow.pop %v516
    %v518 = vsub.f32 %v492, %v498
    %v519 = vsub.f32 %v495, %v499
    %v520 = vmul.f32 %v518, 1.442695
    %v521 = vpow.pop %v520
    %v522 = vmul.f32 %v519, 1.442695
    %v523 = vpow.pop %v522
    %v524 = vadd.f32 %v503, %v509
    %v525 = vadd.f32 %v505, %v511
    %v526 = vrcp.pop %v524
    %v527 = vrcp.pop %v525
    %v528 = vadd.f32 %v515, %v521
    %v529 = vadd.f32 %v517, %v523
    %v530 = vrcp.pop %v528
    %v531 = vrcp.pop %v529
    %v532 = vmul.f32 %v503, %v526
    %v533 = vmul.f32 %v505, %v527
    %v534 = vmul.f32 %v509, %v526
    %v535 = vmul.f32 %v511, %v527
    %v536 = vmul.f32 %v515, %v530
    %v537 = vmul.f32 %v517, %v531
    %v538 = vmul.f32 %v521, %v530
    %v539 = vmul.f32 %v523, %v531
    %v540 = vmul.f32 %v532, %v230
    %v541 = vmul.f32 %v533, %v234
    %v542 = vmul.f32 %v534, %v230
    %v543 = vmul.f32 %v535, %v234
    %546 = vrot.lane.b32.xlu0 %v542, 112
    %v547 = vpop.permute.xlu0 %546
    %548 = vrot.lane.b32.xlu0 %v543, 112
    %v549 = vpop.permute.xlu0 %548
    %v552 = vadd.f32 %v540, %v547
    %v553 = vadd.f32 %v541, %v549
    %v554 = vmul.f32 %v536, %v230
    %v555 = vmul.f32 %v537, %v234
    %v556 = vmul.f32 %v538, %v230
    %v557 = vmul.f32 %v539, %v234
    %560 = vrot.lane.b32.xlu0 %v556, 112
    %v561 = vpop.permute.xlu0 %560
    %562 = vrot.lane.b32.xlu0 %v557, 112
    %v563 = vpop.permute.xlu0 %562
    %v566 = vadd.f32 %v554, %v561
    %v567 = vadd.f32 %v555, %v563
    %v568 = vmul.f32 %v230, %v419
    %v569 = vmul.f32 %v234, %v421
    %572 = vrot.lane.b32.xlu0 %v568, 64
    %v573 = vpop.permute.xlu0 %572
    %574 = vrot.lane.b32.xlu0 %v569, 64
    %v575 = vpop.permute.xlu0 %574
    %v578 = vsel %vm287, %v573, 0.0
    %579 = vadd.xlane.f32.xlu0 %v578
    %v580 = vpop.xlane.xlu0 %579
    %v581 = vsel %vm287, %v575, 0.0
    %582 = vadd.xlane.f32.xlu0 %v581
    %v583 = vpop.xlane.xlu0 %582
    %v584 = vmul.f32 %v230, %v441
    %v585 = vmul.f32 %v234, %v443
    %588 = vrot.lane.b32.xlu0 %v584, 64
    %v589 = vpop.permute.xlu0 %588
    %590 = vrot.lane.b32.xlu0 %v585, 64
    %v591 = vpop.permute.xlu0 %590
    %v594 = vsel %vm287, %v589, 0.0
    %595 = vadd.xlane.f32.xlu0 %v594
    %v596 = vpop.xlane.xlu0 %595
    %v597 = vsel %vm287, %v591, 0.0
    %598 = vadd.xlane.f32.xlu0 %v597
    %v599 = vpop.xlane.xlu0 %598
    %v600 = vmul.f32 %v230, %v463
    %v601 = vmul.f32 %v234, %v465
    %604 = vrot.lane.b32.xlu0 %v600, 48
    %v605 = vpop.permute.xlu0 %604
    %606 = vrot.lane.b32.xlu0 %v601, 48
    %v607 = vpop.permute.xlu0 %606
    %v610 = vsel %vm287, %v605, 0.0
    %611 = vadd.xlane.f32.xlu0 %v610
    %v612 = vpop.xlane.xlu0 %611
    %v613 = vsel %vm287, %v607, 0.0
    %614 = vadd.xlane.f32.xlu0 %v613
    %v615 = vpop.xlane.xlu0 %614
    %616 = vrot.lane.b32.xlu0 %v568, 48
    %v617 = vpop.permute.xlu0 %616
    %618 = vrot.lane.b32.xlu0 %v569, 48
    %v619 = vpop.permute.xlu0 %618
    %v622 = vsel %vm287, %v617, 0.0
    %623 = vadd.xlane.f32.xlu0 %v622
    %v624 = vpop.xlane.xlu0 %623
    %v625 = vsel %vm287, %v619, 0.0
    %626 = vadd.xlane.f32.xlu0 %v625
    %v627 = vpop.xlane.xlu0 %626
    %v628 = vmax.f32 %v580, %v596
    %v629 = vmax.f32 %v583, %v599
    %v630 = vmax.f32 %v612, %v624
    %v631 = vmax.f32 %v615, %v627
    %v632 = vsub.f32 %v580, %v628
    %v633 = vsub.f32 %v583, %v629
    %v634 = vmul.f32 %v632, 1.442695
    %v635 = vpow.pop %v634
    %v636 = vmul.f32 %v633, 1.442695
    %v637 = vpow.pop %v636
    %v638 = vsub.f32 %v596, %v628
    %v639 = vsub.f32 %v599, %v629
    %v640 = vmul.f32 %v638, 1.442695
    %v641 = vpow.pop %v640
    %v642 = vmul.f32 %v639, 1.442695
    %v643 = vpow.pop %v642
    %v644 = vsub.f32 %v612, %v630
    %v645 = vsub.f32 %v615, %v631
    %v646 = vmul.f32 %v644, 1.442695
    %v647 = vpow.pop %v646
    %v648 = vmul.f32 %v645, 1.442695
    %v649 = vpow.pop %v648
    %v650 = vsub.f32 %v624, %v630
    %v651 = vsub.f32 %v627, %v631
    %v652 = vmul.f32 %v650, 1.442695
    %v653 = vpow.pop %v652
    %v654 = vmul.f32 %v651, 1.442695
    %v655 = vpow.pop %v654
    %v656 = vadd.f32 %v635, %v641
    %v657 = vadd.f32 %v637, %v643
    %v658 = vrcp.pop %v656
    %v659 = vrcp.pop %v657
    %v660 = vadd.f32 %v647, %v653
    %v661 = vadd.f32 %v649, %v655
    %v662 = vrcp.pop %v660
    %v663 = vrcp.pop %v661
    %v664 = vmul.f32 %v635, %v658
    %v665 = vmul.f32 %v637, %v659
    %v666 = vmul.f32 %v641, %v658
    %v667 = vmul.f32 %v643, %v659
    %v668 = vmul.f32 %v647, %v662
    %v669 = vmul.f32 %v649, %v663
    %v670 = vmul.f32 %v653, %v662
    %v671 = vmul.f32 %v655, %v663
    %v672 = vmul.f32 %v664, %v271
    %v673 = vmul.f32 %v665, %v274
    %v674 = vmul.f32 %v666, %v271
    %v675 = vmul.f32 %v667, %v274
    %678 = vrot.lane.b32.xlu0 %v674, 112
    %v679 = vpop.permute.xlu0 %678
    %680 = vrot.lane.b32.xlu0 %v675, 112
    %v681 = vpop.permute.xlu0 %680
    %v684 = vadd.f32 %v672, %v679
    %v685 = vadd.f32 %v673, %v681
    %v686 = vmul.f32 %v668, %v271
    %v687 = vmul.f32 %v669, %v274
    %v688 = vmul.f32 %v670, %v271
    %v689 = vmul.f32 %v671, %v274
    %692 = vrot.lane.b32.xlu0 %v688, 112
    %v693 = vpop.permute.xlu0 %692
    %694 = vrot.lane.b32.xlu0 %v689, 112
    %v695 = vpop.permute.xlu0 %694
    %v698 = vadd.f32 %v686, %v693
    %v699 = vadd.f32 %v687, %v695
    %702 = vrot.lane.b32.xlu0 %v271, 96
    %v703 = vpop.permute.xlu0 %702
    %704 = vrot.lane.b32.xlu0 %v274, 96
    %v705 = vpop.permute.xlu0 %704
    %v708 = vmul.f32 %v271, %v703
    %v709 = vmul.f32 %v274, %v705
    %712 = vrot.lane.b32.xlu0 %v708, 96
    %v713 = vpop.permute.xlu0 %712
    %714 = vrot.lane.b32.xlu0 %v709, 96
    %v715 = vpop.permute.xlu0 %714
    %v718 = vsel %vm287, %v713, 0.0
    %719 = vadd.xlane.f32.xlu0 %v718
    %v720 = vpop.xlane.xlu0 %719
    %v721 = vsel %vm287, %v715, 0.0
    %722 = vadd.xlane.f32.xlu0 %v721
    %v723 = vpop.xlane.xlu0 %722
    %724 = vrot.lane.b32.xlu0 %v271, 80
    %v725 = vpop.permute.xlu0 %724
    %726 = vrot.lane.b32.xlu0 %v274, 80
    %v727 = vpop.permute.xlu0 %726
    %v730 = vmul.f32 %v271, %v725
    %v731 = vmul.f32 %v274, %v727
    %734 = vrot.lane.b32.xlu0 %v730, 96
    %v735 = vpop.permute.xlu0 %734
    %736 = vrot.lane.b32.xlu0 %v731, 96
    %v737 = vpop.permute.xlu0 %736
    %v740 = vsel %vm287, %v735, 0.0
    %741 = vadd.xlane.f32.xlu0 %v740
    %v742 = vpop.xlane.xlu0 %741
    %v743 = vsel %vm287, %v737, 0.0
    %744 = vadd.xlane.f32.xlu0 %v743
    %v745 = vpop.xlane.xlu0 %744
    %746 = vrot.lane.b32.xlu0 %v271, 112
    %v747 = vpop.permute.xlu0 %746
    %748 = vrot.lane.b32.xlu0 %v274, 112
    %v749 = vpop.permute.xlu0 %748
    %v752 = vmul.f32 %v271, %v747
    %v753 = vmul.f32 %v274, %v749
    %756 = vrot.lane.b32.xlu0 %v752, 80
    %v757 = vpop.permute.xlu0 %756
    %758 = vrot.lane.b32.xlu0 %v753, 80
    %v759 = vpop.permute.xlu0 %758
    %v762 = vsel %vm287, %v757, 0.0
    %763 = vadd.xlane.f32.xlu0 %v762
    %v764 = vpop.xlane.xlu0 %763
    %v765 = vsel %vm287, %v759, 0.0
    %766 = vadd.xlane.f32.xlu0 %v765
    %v767 = vpop.xlane.xlu0 %766
    %768 = vrot.lane.b32.xlu0 %v708, 80
    %v769 = vpop.permute.xlu0 %768
    %770 = vrot.lane.b32.xlu0 %v709, 80
    %v771 = vpop.permute.xlu0 %770
    %v774 = vsel %vm287, %v769, 0.0
    %775 = vadd.xlane.f32.xlu0 %v774
    %v776 = vpop.xlane.xlu0 %775
    %v777 = vsel %vm287, %v771, 0.0
    %778 = vadd.xlane.f32.xlu0 %v777
    %v779 = vpop.xlane.xlu0 %778
    %v780 = vmax.f32 %v720, %v742
    %v781 = vmax.f32 %v723, %v745
    %v782 = vmax.f32 %v764, %v776
    %v783 = vmax.f32 %v767, %v779
    %v784 = vsub.f32 %v720, %v780
    %v785 = vsub.f32 %v723, %v781
    %v786 = vmul.f32 %v784, 1.442695
    %v787 = vpow.pop %v786
    %v788 = vmul.f32 %v785, 1.442695
    %v789 = vpow.pop %v788
    %v790 = vsub.f32 %v742, %v780
    %v791 = vsub.f32 %v745, %v781
    %v792 = vmul.f32 %v790, 1.442695
    %v793 = vpow.pop %v792
    %v794 = vmul.f32 %v791, 1.442695
    %v795 = vpow.pop %v794
    %v796 = vsub.f32 %v764, %v782
    %v797 = vsub.f32 %v767, %v783
    %v798 = vmul.f32 %v796, 1.442695
    %v799 = vpow.pop %v798
    %v800 = vmul.f32 %v797, 1.442695
    %v801 = vpow.pop %v800
    %v802 = vsub.f32 %v776, %v782
    %v803 = vsub.f32 %v779, %v783
    %v804 = vmul.f32 %v802, 1.442695
    %v805 = vpow.pop %v804
    %v806 = vmul.f32 %v803, 1.442695
    %v807 = vpow.pop %v806
    %v808 = vadd.f32 %v787, %v793
    %v809 = vadd.f32 %v789, %v795
    %v810 = vrcp.pop %v808
    %v811 = vrcp.pop %v809
    %v812 = vadd.f32 %v799, %v805
    %v813 = vadd.f32 %v801, %v807
    %v814 = vrcp.pop %v812
    %v815 = vrcp.pop %v813
    %v816 = vmul.f32 %v787, %v810
    %v817 = vmul.f32 %v789, %v811
    %v818 = vmul.f32 %v793, %v810
    %v819 = vmul.f32 %v795, %v811
    %v820 = vmul.f32 %v799, %v814
    %v821 = vmul.f32 %v801, %v815
    %v822 = vmul.f32 %v805, %v814
    %v823 = vmul.f32 %v807, %v815
    %v824 = vmul.f32 %v816, %v271
    %v825 = vmul.f32 %v817, %v274
    %v826 = vmul.f32 %v818, %v271
    %v827 = vmul.f32 %v819, %v274
    %830 = vrot.lane.b32.xlu0 %v826, 112
    %v831 = vpop.permute.xlu0 %830
    %832 = vrot.lane.b32.xlu0 %v827, 112
    %v833 = vpop.permute.xlu0 %832
    %v836 = vadd.f32 %v824, %v831
    %v837 = vadd.f32 %v825, %v833
    %v838 = vmul.f32 %v820, %v271
    %v839 = vmul.f32 %v821, %v274
    %v840 = vmul.f32 %v822, %v271
    %v841 = vmul.f32 %v823, %v274
    %844 = vrot.lane.b32.xlu0 %v840, 112
    %v845 = vpop.permute.xlu0 %844
    %846 = vrot.lane.b32.xlu0 %v841, 112
    %v847 = vpop.permute.xlu0 %846
    %v850 = vadd.f32 %v838, %v845
    %v851 = vadd.f32 %v839, %v847
    %854 = vrot.lane.b32.xlu0 %v400, 64
    %v855 = vpop.permute.xlu0 %854
    %856 = vrot.lane.b32.xlu0 %v401, 64
    %v857 = vpop.permute.xlu0 %856
    %862 = vrot.lane.b32.xlu0 %v414, 80
    %v863 = vpop.permute.xlu0 %862
    %864 = vrot.lane.b32.xlu0 %v415, 80
    %v865 = vpop.permute.xlu0 %864
    %870 = vrot.lane.b32.xlu0 %v566, 16
    %v871 = vpop.permute.xlu0 %870
    %872 = vrot.lane.b32.xlu0 %v567, 16
    %v873 = vpop.permute.xlu0 %872
    %878 = vrot.lane.b32.xlu0 %v684, 64
    %v879 = vpop.permute.xlu0 %878
    %880 = vrot.lane.b32.xlu0 %v685, 64
    %v881 = vpop.permute.xlu0 %880
    %886 = vrot.lane.b32.xlu0 %v698, 80
    %v887 = vpop.permute.xlu0 %886
    %888 = vrot.lane.b32.xlu0 %v699, 80
    %v889 = vpop.permute.xlu0 %888
    %894 = vrot.lane.b32.xlu0 %v850, 16
    %v895 = vpop.permute.xlu0 %894
    %896 = vrot.lane.b32.xlu0 %v851, 16
    %v897 = vpop.permute.xlu0 %896
    %v900 = vsel %vm287, %v855, %v863
    %v901 = vsel %vm287, %v857, %v865
    %vm902 = vcmask 261120
    %v903 = vsel %vm902, %v900, %v552
    %v904 = vsel %vm902, %v901, %v553
    %vm905 = vcmask 392192
    %v906 = vsel %vm905, %v903, %v871
    %v907 = vsel %vm905, %v904, %v873
    %vm908 = vcmask 523264
    %v909 = vsel %vm908, %v906, %v879
    %v910 = vsel %vm908, %v907, %v881
    %vm911 = vcmask 654336
    %v912 = vsel %vm911, %v909, %v887
    %v913 = vsel %vm911, %v910, %v889
    %vm914 = vcmask 785408
    %v915 = vsel %vm914, %v912, %v836
    %v916 = vsel %vm914, %v913, %v837
    %vm917 = vcmask 916480
    %v918 = vsel %vm917, %v915, %v895
    %v919 = vsel %vm917, %v916, %v897
    %v920 = vpack.c.bf16 %v919, %v918
    %v922 = vunpack.c.l.b16 %v920
    %v923 = vunpack.c.h.b16 %v920
    %v924 = vpack.c.b16 %v922, %v922
    %v925 = vpack.c.b16 %v923, %v923
    %928 = vst [vmem:[%s3] sm:$0xf] %v924
    %929 = vst [vmem:[%s3 + $0x4] sm:$0xf] %v925
    // Predicated region
    $region18: #{model_forward.1} parent=1 // pred_check
      _
    $region19: #{model_forward.1} parent=1 // pred_check_branch
      %931 = sbr.rel (0) target = $region21
    $region20: #{model_forward.1} parent=1 // pred_region
      _
    $region21: #{model_forward.1} parent=1 // pred_fallthru
      _
    // Predicated region
    $region22: #{model_forward.1} parent=1 // pred_check
      _
    $region23: #{model_forward.1} parent=1 // pred_check_branch
      %933 = sbr.rel (0) target = $region25
    $region24: #{model_forward.1} parent=1 // pred_region
      _
    $region25: #{model_forward.1} parent=1 // pred_fallthru
      _
    %934 = vsyncpa [#allocation4], 1

</llo_original>
